<compile_context>
chip_gen: v5e
topology: v5e:2x2
jax: 0.10.0
libtpu: 0.0.40
codegen_flags: <defaults>
</compile_context>

<pallas_src>
import jax
import jax.numpy as jnp
from jax.experimental import pallas as pl
from jax.experimental.pallas import tpu as pltpu

_LANE = 128


def _make_kernel(*, rows_per_step, chunk_rows, n_chunks, batch, sub, need_mask):
    """Build the streaming-reduction kernel (all sizes are static Python ints)."""

    def kernel(params_ref, w_ref, p_ref, t_ref, out_ref, acc_ref):
        # params_ref : SMEM (2,)   f32   [scale, const]
        # w_ref      : VMEM (1, C) f32   0.5*exp(-2*log_sigma) repeated x3 (lane n*3+c)
        # p_ref/t_ref: VMEM (rows_per_step, C)  input dtype (f32 / bf16)
        # out_ref    : VMEM (1, 1) f32   final scalar loss
        # acc_ref    : VMEM (1, C) f32   running per-lane sum of squared errors
        step = pl.program_id(0)

        @pl.when(step == 0)
        def _():
            acc_ref[...] = jnp.zeros_like(acc_ref)

        def chunk_body(k, carry):
            start = pl.multiple_of(k * chunk_rows, sub)
            p = p_ref[pl.ds(start, chunk_rows), :].astype(jnp.float32)
            t = t_ref[pl.ds(start, chunk_rows), :].astype(jnp.float32)
            d = p - t
            if need_mask:
                # Rows >= batch hold unspecified (out-of-bounds block) data; zero them
                # BEFORE squaring so garbage (incl. NaN/Inf) never reaches the sum.
                row = (step * rows_per_step + start
                       + jax.lax.broadcasted_iota(jnp.int32, (chunk_rows, 1), 0))
                d = jnp.where(row < batch, d, 0.0)
            return carry + jnp.sum(d * d, axis=0, keepdims=True)   # (1, C)

        tile_sum = jax.lax.fori_loop(
            0, n_chunks, chunk_body,
            jnp.zeros(acc_ref.shape, jnp.float32),
            unroll=(n_chunks <= 8))
        acc_ref[...] += tile_sum

        @pl.when(step == pl.num_programs(0) - 1)
        def _():
            weighted = w_ref[...] * acc_ref[...]                   # (1, C)
            total = jnp.sum(weighted, axis=1, keepdims=True)       # (1, 1)
            out_ref[...] = total * params_ref[0] + params_ref[1]

    return kernel


def _tile_sizes(batch, c, elem_bytes, max_step_rows=None, max_chunk_rows=None):
    """Pick (sub, lanes, chunk_rows, n_chunks, rows_per_step) for the streaming loop."""
    sub = max(8, 32 // elem_bytes)                 # native sublane tile: 8 f32 / 16 bf16 / 32 int8
    lanes = -(-c // _LANE) * _LANE                 # VMEM-footprint accounting only (no padding done)
    rows_needed = -(-batch // sub) * sub

    # Row chunk for the in-kernel axis-0 reduction: ~1 MiB of f32 temporaries.
    chunk_rows = max(sub, ((1 << 20) // (lanes * 4)) // sub * sub)
    chunk_rows = min(chunk_rows, rows_needed)
    if max_chunk_rows is not None:                 # test-only knob
        chunk_rows = max(sub, min(chunk_rows, (max_chunk_rows // sub) * sub))

    # Rows per grid step: ~6 MiB of VMEM per (double-buffered) input tile.
    n_chunks = max(1, (6 << 20) // (chunk_rows * lanes * elem_bytes))
    n_chunks = min(n_chunks, -(-rows_needed // chunk_rows))
    if max_step_rows is not None:                  # test-only knob
        n_chunks = min(n_chunks, max(1, max_step_rows // chunk_rows))
    rows_per_step = chunk_rows * n_chunks
    return sub, lanes, chunk_rows, n_chunks, rows_per_step


def adaptive_keypoint_uncertainty_loss(preds, targets, log_sigma, reduction="mean",
                                       _max_step_rows=None, _max_chunk_rows=None):
    """preds, targets: (B, N, 3) (f32 or bf16). log_sigma: (N,). Returns scalar f32."""
    assert preds.ndim == 3 and preds.shape[-1] == 3, preds.shape
    assert preds.shape == targets.shape, (preds.shape, targets.shape)
    B, N, _ = preds.shape
    assert log_sigma.shape == (N,), log_sigma.shape
    assert reduction in ("mean", "sum")

    C = 3 * N
    elem_bytes = preds.dtype.itemsize
    sub, lanes, chunk_rows, n_chunks, rows_per_step = _tile_sizes(
        B, C, elem_bytes, _max_step_rows, _max_chunk_rows)
    num_steps = -(-B // rows_per_step)
    need_mask = (B % rows_per_step) != 0

    # Free row-major collapse of (N, 3) -> C; no padding, no extra HBM pass.
    p2 = preds.reshape(B, C)
    t2 = targets.reshape(B, C)

    # Tiny precompute (EUP work stays out of the streaming loop).
    ls = log_sigma.astype(jnp.float32)
    w = jnp.repeat(0.5 * jnp.exp(-2.0 * ls), 3).reshape(1, C)     # lane order n*3+c
    sum_ls = jnp.sum(ls)
    if reduction == "mean":
        scale, const = jnp.float32(1.0 / B), sum_ls
    else:
        scale, const = jnp.float32(1.0), jnp.float32(B) * sum_ls
    params = jnp.stack([scale, const]).astype(jnp.float32)        # (2,) -> SMEM

    kernel = _make_kernel(rows_per_step=rows_per_step, chunk_rows=chunk_rows,
                          n_chunks=n_chunks, batch=B, sub=sub, need_mask=need_mask)

    # 2 inputs x 2 pipeline buffers of the (tile-padded) block, plus headroom
    # for the ~1 MiB chunk temporaries and the tiny acc/w buffers.
    tile_vmem = rows_per_step * lanes * elem_bytes
    vmem_limit = int(min(48 << 20, max(32 << 20, 4 * tile_vmem + (8 << 20))))

    out = pl.pallas_call(
        kernel,
        out_shape=jax.ShapeDtypeStruct((1, 1), jnp.float32),
        grid=(num_steps,),
        in_specs=[
            pl.BlockSpec(memory_space=pltpu.MemorySpace.SMEM),       # params
            pl.BlockSpec((1, C), lambda i: (0, 0)),                  # w (resident)
            pl.BlockSpec((rows_per_step, C), lambda i: (i, 0)),      # preds tile
            pl.BlockSpec((rows_per_step, C), lambda i: (i, 0)),      # targets tile
        ],
        out_specs=pl.BlockSpec((1, 1), lambda i: (0, 0)),
        scratch_shapes=[pltpu.VMEM((1, C), jnp.float32)],
        compiler_params=pltpu.CompilerParams(
            dimension_semantics=("arbitrary",),
            vmem_limit_bytes=vmem_limit),
    )(params, w, p2, t2)
    return out[0, 0]


def _reference(preds, targets, log_sigma, reduction="mean"):
    sq_err = jnp.sum((preds.astype(jnp.float32) - targets.astype(jnp.float32)) ** 2, axis=-1)
    ls = log_sigma.astype(jnp.float32)[None, :]
    loss_pp = 0.5 * jnp.exp(-2.0 * ls) * sq_err + ls
    per_sample = loss_pp.sum(axis=1)
    return per_sample.mean() if reduction == "mean" else per_sample.sum()


if __name__ == "__main__":
    B, N = 2, 8  # batch size, number of keypoints

    key = jax.random.PRNGKey(0)
    k_preds, k_targets, k_sigma = jax.random.split(key, 3)

    preds = jax.random.normal(k_preds, (B, N, 3), dtype=jnp.float32)
    targets = jax.random.normal(k_targets, (B, N, 3), dtype=jnp.float32)
    # PyTorch __init__ uses zeros(num_keypoints); perturb so exp(-2*log_sigma) != 1.
    log_sigma = 0.1 * jax.random.normal(k_sigma, (N,), dtype=jnp.float32)

    # f32, reduction='mean'
    out = jax.block_until_ready(
        adaptive_keypoint_uncertainty_loss(preds, targets, log_sigma, "mean"))
    ref = _reference(preds, targets, log_sigma, "mean")
    assert jnp.allclose(out, ref, rtol=1e-5, atol=1e-5), (out, ref)

    # f32, reduction='sum'
    out_s = jax.block_until_ready(
        adaptive_keypoint_uncertainty_loss(preds, targets, log_sigma, "sum"))
    ref_s = _reference(preds, targets, log_sigma, "sum")
    assert jnp.allclose(out_s, ref_s, rtol=1e-5, atol=1e-5), (out_s, ref_s)

    # bf16 inputs: DMA'd as bf16 with 16-row sublane tiles, cast to f32 in-kernel.
    preds_bf = preds.astype(jnp.bfloat16)
    targets_bf = targets.astype(jnp.bfloat16)
    out_bf = jax.block_until_ready(
        adaptive_keypoint_uncertainty_loss(preds_bf, targets_bf, log_sigma, "mean"))
    ref_bf = _reference(preds_bf, targets_bf, log_sigma, "mean")
    assert jnp.allclose(out_bf, ref_bf, rtol=1e-2, atol=1e-2), (out_bf, ref_bf)

    # Multi-step grid + in-kernel batch-tail masking + multi-chunk reduction
    # (small shapes; knobs force several grid steps and >1 chunk per step).
    B2, N2 = 37, 5
    k1, k2, k3 = jax.random.split(jax.random.PRNGKey(1), 3)
    p2 = jax.random.normal(k1, (B2, N2, 3), dtype=jnp.float32)
    t2 = jax.random.normal(k2, (B2, N2, 3), dtype=jnp.float32)
    ls2 = 0.1 * jax.random.normal(k3, (N2,), dtype=jnp.float32)
    out_m = jax.block_until_ready(
        adaptive_keypoint_uncertainty_loss(p2, t2, ls2, "mean",
                                           _max_step_rows=16, _max_chunk_rows=8))
    ref_m = _reference(p2, t2, ls2, "mean")
    assert jnp.allclose(out_m, ref_m, rtol=1e-5, atol=1e-5), (out_m, ref_m)

    print("KERNEL_OK")
</pallas_src>

<mosaic_0001>
module attributes {stable_mosaic.version = 11 : i64} {
  func.func @kernel(%arg0: i32, %arg1: memref<2xf32, #tpu.memory_space<smem>>, %arg2: memref<1x24xf32, #tpu.memory_space<vmem>>, %arg3: memref<8x24xf32, #tpu.memory_space<vmem>>, %arg4: memref<8x24xf32, #tpu.memory_space<vmem>>, %arg5: memref<1x1xf32, #tpu.memory_space<vmem>>, %arg6: memref<1x24xf32, #tpu.memory_space<vmem>>) attributes {dimension_semantics = [#tpu.dimension_semantics<arbitrary>], iteration_bounds = array<i64: 1>, scalar_prefetch = 0 : i64, scratch_operands = 1 : i64, tpu.core_type = #tpu.core_type<tc>, window_params = [{transform_indices = @transform_0, window_bounds = array<i64: 2>}, {pipeline_mode = #tpu.pipeline_mode<synchronous>, transform_indices = @transform_1, window_bounds = array<i64: 1, 24>}, {transform_indices = @transform_2, window_bounds = array<i64: 8, 24>}, {transform_indices = @transform_3, window_bounds = array<i64: 8, 24>}, {pipeline_mode = #tpu.pipeline_mode<synchronous>, transform_indices = @transform_4, window_bounds = array<i64: 1, 1>}]} {
    %c0_i32 = arith.constant 0 : i32
    %0 = arith.cmpi eq, %arg0, %c0_i32 : i32
    %1 = arith.extui %0 : i1 to i32
    %c0_i32_0 = arith.constant 0 : i32
    %2 = arith.cmpi ne, %1, %c0_i32_0 : i32
    scf.if %2 {
      %cst_12 = arith.constant 0.000000e+00 : f32
      %32 = vector.broadcast %cst_12 : f32 to vector<1x24xf32>
      %c0_13 = arith.constant 0 : index
      %c0_14 = arith.constant 0 : index
      %33 = vector.load %arg6[%c0_13, %c0_14] : memref<1x24xf32, #tpu.memory_space<vmem>>, vector<1x24xf32>
      tpu.vector_store %arg6[%c0_13, %c0_14], %32 {strides = array<i32>} : memref<1x24xf32, #tpu.memory_space<vmem>>, vector<1x24xf32>,
    } else {
    }
    %cst = arith.constant 0.000000e+00 : f32
    %3 = vector.broadcast %cst : f32 to vector<1x24xf32>
    %c0_i32_1 = arith.constant 0 : i32
    %c8_i32 = arith.constant 8 : i32
    %4 = arith.muli %c0_i32_1, %c8_i32 : i32
    %5 = tpu.assume_multiple %4, 8 : i32
    %6 = arith.index_cast %5 : i32 to index
    %c0 = arith.constant 0 : index
    %7 = vector.load %arg3[%6, %c0] : memref<8x24xf32, #tpu.memory_space<vmem>>, vector<8x24xf32>
    %8 = arith.index_cast %5 : i32 to index
    %c0_2 = arith.constant 0 : index
    %9 = vector.load %arg4[%8, %c0_2] : memref<8x24xf32, #tpu.memory_space<vmem>>, vector<8x24xf32>
    %10 = arith.subf %7, %9 : vector<8x24xf32>
    %c8_i32_3 = arith.constant 8 : i32
    %11 = arith.muli %arg0, %c8_i32_3 : i32
    %12 = arith.addi %11, %5 : i32
    %13 = tpu.iota {dimensions = array<i32: 0>} : vector<8x1xi32>
    %14 = vector.broadcast %12 : i32 to vector<8x1xi32>
    %15 = arith.addi %14, %13 : vector<8x1xi32>
    %c2_i32 = arith.constant 2 : i32
    %16 = vector.broadcast %c2_i32 : i32 to vector<8x1xi32>
    %17 = arith.cmpi slt, %15, %16 : vector<8x1xi32>
    %cst_4 = arith.constant 0.000000e+00 : f32
    %18 = vector.shape_cast %17 : vector<8x1xi1> to vector<8x1xi1>
    %19 = vector.broadcast %18 : vector<8x1xi1> to vector<8x24xi1>
    %20 = vector.broadcast %cst_4 : f32 to vector<8x24xf32>
    %21 = arith.select %19, %10, %20 : vector<8x24xi1>, vector<8x24xf32>
    %22 = arith.mulf %21, %21 : vector<8x24xf32>
    %cst_5 = arith.constant dense<0.000000e+00> : vector<24xf32>
    %23 = vector.multi_reduction <add>, %22, %cst_5 [0] : vector<8x24xf32> to vector<24xf32>
    %24 = vector.shape_cast %23 : vector<24xf32> to vector<1x24xf32>
    %25 = arith.addf %3, %24 : vector<1x24xf32>
    %c1_i32 = arith.constant 1 : i32
    %c0_6 = arith.constant 0 : index
    %c0_7 = arith.constant 0 : index
    %26 = vector.load %arg6[%c0_6, %c0_7] : memref<1x24xf32, #tpu.memory_space<vmem>>, vector<1x24xf32>
    %27 = arith.addf %26, %25 : vector<1x24xf32>
    %c0_8 = arith.constant 0 : index
    %c0_9 = arith.constant 0 : index
    %28 = vector.load %arg6[%c0_8, %c0_9] : memref<1x24xf32, #tpu.memory_space<vmem>>, vector<1x24xf32>
    tpu.vector_store %arg6[%c0_8, %c0_9], %27 {strides = array<i32>} : memref<1x24xf32, #tpu.memory_space<vmem>>, vector<1x24xf32>,
    %c0_i32_10 = arith.constant 0 : i32
    %29 = arith.cmpi eq, %arg0, %c0_i32_10 : i32
    %30 = arith.extui %29 : i1 to i32
    %c0_i32_11 = arith.constant 0 : i32
    %31 = arith.cmpi ne, %30, %c0_i32_11 : i32
    scf.if %31 {
      %c0_12 = arith.constant 0 : index
      %c0_13 = arith.constant 0 : index
      %32 = vector.load %arg2[%c0_12, %c0_13] : memref<1x24xf32, #tpu.memory_space<vmem>>, vector<1x24xf32>
      %c0_14 = arith.constant 0 : index
      %c0_15 = arith.constant 0 : index
      %33 = vector.load %arg6[%c0_14, %c0_15] : memref<1x24xf32, #tpu.memory_space<vmem>>, vector<1x24xf32>
      %34 = arith.mulf %32, %33 : vector<1x24xf32>
      %cst_16 = arith.constant dense<0.000000e+00> : vector<1xf32>
      %35 = vector.multi_reduction <add>, %34, %cst_16 [1] : vector<1x24xf32> to vector<1xf32>
      %36 = vector.shape_cast %35 : vector<1xf32> to vector<1x1xf32>
      %c0_17 = arith.constant 0 : index
      %37 = memref.load %arg1[%c0_17] : memref<2xf32, #tpu.memory_space<smem>>
      %38 = vector.broadcast %37 : f32 to vector<1x1xf32>
      %39 = arith.mulf %36, %38 : vector<1x1xf32>
      %c1 = arith.constant 1 : index
      %40 = memref.load %arg1[%c1] : memref<2xf32, #tpu.memory_space<smem>>
      %41 = vector.broadcast %40 : f32 to vector<1x1xf32>
      %42 = arith.addf %39, %41 : vector<1x1xf32>
      %c0_18 = arith.constant 0 : index
      %c0_19 = arith.constant 0 : index
      %43 = vector.load %arg5[%c0_18, %c0_19] : memref<1x1xf32, #tpu.memory_space<vmem>>, vector<1x1xf32>
      tpu.vector_store %arg5[%c0_18, %c0_19], %42 {strides = array<i32>} : memref<1x1xf32, #tpu.memory_space<vmem>>, vector<1x1xf32>,
    } else {
    }
    return
  }
  func.func @transform_0(%arg0: i32) -> i32 {
    %c0_i32 = arith.constant 0 : i32
    %c0_i32_0 = arith.constant 0 : i32
    return %c0_i32 : i32
  }
  func.func @transform_1(%arg0: i32) -> (i32, i32) {
    %c0_i32 = arith.constant 0 : i32
    %c0_i32_0 = arith.constant 0 : i32
    %c0_i32_1 = arith.constant 0 : i32
    return %c0_i32, %c0_i32_0 : i32, i32
  }
  func.func @transform_2(%arg0: i32) -> (i32, i32) {
    %c0_i32 = arith.constant 0 : i32
    %c0_i32_0 = arith.constant 0 : i32
    return %arg0, %c0_i32 : i32, i32
  }
  func.func @transform_3(%arg0: i32) -> (i32, i32) {
    %c0_i32 = arith.constant 0 : i32
    %c0_i32_0 = arith.constant 0 : i32
    return %arg0, %c0_i32 : i32, i32
  }
  func.func @transform_4(%arg0: i32) -> (i32, i32) {
    %c0_i32 = arith.constant 0 : i32
    %c0_i32_0 = arith.constant 0 : i32
    %c0_i32_1 = arith.constant 0 : i32
    return %c0_i32, %c0_i32_0 : i32, i32
  }
}

</mosaic_0001>

<llo_original>
// kernel: tpu_custom_call.1
$region0: #{tpu_custom_call.1}
  #allocation0 [shape = 'u32[]', space=smem, size = 0x4, offset = 0x4, fixed_abs, tag = 'smem constant byte address 0x4 - core index']
  #allocation1 [shape = 'u32[72,128]{1,0:T(1,128)}', space=vmem, size = 0x9000, scoped, tag = 'internal scratch']
  #allocation2 [shape = 'f32[1,24]{1,0:T(1,128)}', space=vmem, size = 0x200, scoped, tag = 'scratch operand']
  %s0 = inlined_call_operand.hbm [shape: f32[2], index: 0, kind: input, shape index: {}]
  %s1 = inlined_call_operand.hbm [shape: f32[1,24], index: 1, kind: input, shape index: {}]
  %s2 = inlined_call_operand.hbm [shape: f32[2,24], index: 2, kind: input, shape index: {}]
  %s3 = inlined_call_operand.vmem [shape: f32[2,24], index: 3, kind: input, shape index: {}]
  %s4 = inlined_call_operand.hbm [shape: f32[1,1], index: 4, kind: output, shape index: {}]
  %s5 = sld [smem:[#allocation0]]
  $region46: #{tpu_custom_call.1} parent=0
    _
  %s7 = ssub.s32 1, %s5
  %s8 = scalar_select 0, %s7, %s5
  $region1: #{tpu_custom_call.1} parent=0
    #allocation3 [shape = 'u8[512]{0}', space=smem, size = 0x200, scoped, tag = 'input window, operand 0, single buffered']
    #allocation4 [shape = 's32[1]{0}', space=sflag, size = 0x4, scoped, tag = 'scoped memory for tpu_custom_call.1']
    #allocation5 [shape = 's32[1]{0}', space=sflag, size = 0x4, scoped, tag = 'scoped memory for tpu_custom_call.1']
    #allocation6 [shape = 's32[1]{0}', space=sflag, size = 0x4, scoped, tag = 'scoped memory for tpu_custom_call.1']
    #allocation7 [shape = 'u8[512]{0}', space=vmem, size = 0x400, scoped, tag = 'input window, operand 1, single buffered']
    #allocation8 [shape = 'u8[4096]{0}', space=vmem, size = 0x1000, scoped, tag = 'input window, operand 2, single buffered']
    #allocation9 [shape = 's32[1]{0}', space=sflag, size = 0x4, scoped, tag = 'scoped memory for tpu_custom_call.1']
    #allocation10 [shape = 'u8[512]{0}', space=vmem, size = 0x400, scoped, tag = 'output window, operand 0, single buffered']
    %9 = vsyncpa [#allocation6], 0
    %10 = vsyncpa [#allocation4], 0
    %11 = vsyncpa [#allocation9], 0
    %12 = vsyncpa [#allocation5], 0
    // Predicated region
    $region2: #{tpu_custom_call.1} parent=1 // pred_check
      _
    $region3: #{tpu_custom_call.1} parent=1 // pred_check_branch
      %14 = sbr.rel (0) target = $region5
    $region4: #{tpu_custom_call.1} parent=1 // pred_region
      %16 = vsyncadd [#allocation6], 0
      %s18 = sshll.u32 %s0, 4
      %s19 = int_to_ptr.hbm [resolvable:$true] %s18
      %21 = dma.hbm_to_smem %s19, 16, [#allocation3], [#allocation6]
    $region5: #{tpu_custom_call.1} parent=1 // pred_fallthru
      _
    // Predicated region
    $region6: #{tpu_custom_call.1} parent=1 // pred_check
      _
    $region7: #{tpu_custom_call.1} parent=1 // pred_check_branch
      %23 = sbr.rel (0) target = $region9
    $region8: #{tpu_custom_call.1} parent=1 // pred_region
      %25 = vsyncadd [#allocation4], 0
      %s27 = sshll.u32 %s1, 4
      %s28 = int_to_ptr.hbm [resolvable:$true] %s27
      %s29 = sshll.u32 [#allocation7], 4
      %s30 = int_to_ptr.vmem [resolvable:$true] %s29
      %32 = dma.hbm_to_vmem [thread:$0]  %s28, 16, %s30, [#allocation4]
    $region9: #{tpu_custom_call.1} parent=1 // pred_fallthru
      _
    // Predicated region
    $region10: #{tpu_custom_call.1} parent=1 // pred_check
      _
    $region11: #{tpu_custom_call.1} parent=1 // pred_check_branch
      %34 = sbr.rel (0) target = $region13
    $region12: #{tpu_custom_call.1} parent=1 // pred_region
      %36 = vsyncadd [#allocation9], 96
      %s37 = sshll.u32 %s2, 4
      %s38 = int_to_ptr.hbm [resolvable:$true] %s37
      %s39 = sshll.u32 [#allocation8], 4
      %s40 = int_to_ptr.vmem [resolvable:$true] %s39
      %45 = dma.hbm_to_vmem [thread:$0]  %s38, 32, %s40, [#allocation9], 32, 32, 2
    $region13: #{tpu_custom_call.1} parent=1 // pred_fallthru
      _
    // Predicated region
    $region14: #{tpu_custom_call.1} parent=1 // pred_check
      _
    $region15: #{tpu_custom_call.1} parent=1 // pred_check_branch
      %47 = sbr.rel (0) target = $region17
    $region16: #{tpu_custom_call.1} parent=1 // pred_region
      _
    $region17: #{tpu_custom_call.1} parent=1 // pred_fallthru
      _
    // Predicated region
    $region18: #{tpu_custom_call.1} parent=1 // pred_check
      _
    $region19: #{tpu_custom_call.1} parent=1 // pred_check_branch
      %49 = sbr.rel (0) target = $region21
    $region20: #{tpu_custom_call.1} parent=1 // pred_region
      %51 = dma.done [#allocation6], 16
    $region21: #{tpu_custom_call.1} parent=1 // pred_fallthru
      _
    // Predicated region
    $region22: #{tpu_custom_call.1} parent=1 // pred_check
      _
    $region23: #{tpu_custom_call.1} parent=1 // pred_check_branch
      %53 = sbr.rel (0) target = $region25
    $region24: #{tpu_custom_call.1} parent=1 // pred_region
      %55 = dma.done [#allocation4], 16
    $region25: #{tpu_custom_call.1} parent=1 // pred_fallthru
      _
    // Predicated region
    $region26: #{tpu_custom_call.1} parent=1 // pred_check
      _
    $region27: #{tpu_custom_call.1} parent=1 // pred_check_branch
      %57 = sbr.rel (0) target = $region29
    $region28: #{tpu_custom_call.1} parent=1 // pred_region
      %59 = dma.done [#allocation9], 128
    $region29: #{tpu_custom_call.1} parent=1 // pred_fallthru
      _
    %60 = sfence
    %p61 = scmp.eq.s32.totalorder 0, 0
    // Predicated region
    $region30: #{tpu_custom_call.1} parent=1 // pred_check
      %p62 = pneg %p61
    $region31: #{tpu_custom_call.1} parent=1 // pred_check_branch
      %64 = sbr.rel (%p62) target = $region33
    $region32: #{tpu_custom_call.1} parent=1 // pred_region
      %vm65 = vcmask 188416
      %66 = vst.msk [vmem:[#allocation2] sm:$0x1] %vm65, 0.0
    $region33: #{tpu_custom_call.1} parent=1 // pred_fallthru
      _
    %v67 = vld [vmem:[#allocation8] sm:$0xff]
    %v68 = vld [vmem:[%s3] sm:$0xff]
    %v69 = vsub.f32 %v67, %v68
    %s70 = smul.u32 0, 8
    %s71 = sadd.s32 %s70, 0
    %v72 = vlaneseq
    %v73 = vshrl.u32 %v72, 7
    %v74 = vstv %s71
    %v75 = vadd.s32 %v74, %v73
    %vm76 = vcmp.lt.s32.totalorder %v75, 2
    %v77 = vsel %vm76, 1, 0
    %vm78 = vcmp.eq.s32.totalorder %v77, 1
    %v79 = vsel %vm78, %v69, 0.0
    %v80 = vmul.f32 %v79, %v79
    %vm81 = vcmask 195584
    %v82 = vsel %vm81, %v80, 0.0
    %v83 = vrot.slane %v82, 4
    %v84 = vadd.f32 %v82, %v83
    %v85 = vrot.slane %v84, 2
    %v86 = vadd.f32 %v84, %v85
    %v87 = vrot.slane %v86, 1
    %v88 = vadd.f32 %v86, %v87
    %v89 = vadd.f32 %v88, 0.0
    %v90 = vld [vmem:[#allocation2] sm:$0x1]
    %v91 = vadd.f32 %v90, %v89
    %vm92 = vcmask 188416
    %93 = vst.msk [vmem:[#allocation2] sm:$0x1] %vm92, %v91
    // Predicated region
    $region34: #{tpu_custom_call.1} parent=1 // pred_check
      %p94 = pneg %p61
    $region35: #{tpu_custom_call.1} parent=1 // pred_check_branch
      %96 = sbr.rel (%p94) target = $region37
    $region36: #{tpu_custom_call.1} parent=1 // pred_region
      %v97 = vld [vmem:[#allocation7] sm:$0x1]
      %v98 = vld [vmem:[#allocation2] sm:$0x1]
      %v99 = vmul.f32 %v97, %v98
      %v100 = vsel %vm92, %v99, 0.0
      %101 = vadd.xlane.f32.xlu0 %v100
      %v102 = vpop.xlane.xlu0 %101
      %s103 = sld [smem:[#allocation3]]
      %v104 = vstv %s103
      %v105 = vmul.f32 %v102, %v104
      %s106 = sld [smem:[#allocation3 + $0x1]]
      %v107 = vstv %s106
      %v108 = vadd.f32 %v105, %v107
      %vm109 = vcmask 0
      %110 = vst.msk [vmem:[#allocation10] sm:$0x1] %vm109, %v108
    $region37: #{tpu_custom_call.1} parent=1 // pred_fallthru
      _
    // Predicated region
    $region38: #{tpu_custom_call.1} parent=1 // pred_check
      _
    $region39: #{tpu_custom_call.1} parent=1 // pred_check_branch
      %112 = sbr.rel (0) target = $region41
    $region40: #{tpu_custom_call.1} parent=1 // pred_region
      %114 = vsyncadd [#allocation5], 0
      %s116 = sshll.u32 [#allocation10], 4
      %s117 = int_to_ptr.vmem [resolvable:$true] %s116
      %s118 = sshll.u32 %s4, 4
      %s119 = int_to_ptr.hbm [resolvable:$true] %s118
      %121 = dma.vmem_to_hbm [thread:$0]  %s117, 16, %s119, [#allocation5]
    $region41: #{tpu_custom_call.1} parent=1 // pred_fallthru
      _
    // Predicated region
    $region42: #{tpu_custom_call.1} parent=1 // pred_check
      _
    $region43: #{tpu_custom_call.1} parent=1 // pred_check_branch
      %123 = sbr.rel (0) target = $region45
    $region44: #{tpu_custom_call.1} parent=1 // pred_region
      %125 = dma.done [#allocation5], 16
    $region45: #{tpu_custom_call.1} parent=1 // pred_fallthru
      _
    %126 = vsyncpa [#allocation4], 1
    %127 = vsyncpa [#allocation9], 1
    %128 = vsyncpa [#allocation5], 1
    %129 = vsyncpa [#allocation6], 1

</llo_original>
